<compile_context>
chip_gen: v6e
topology: v6e:2x2x1
jax: 0.10.0
libtpu: 0.0.40
codegen_flags: <defaults>
</compile_context>

<pallas_src>
import functools

import jax
import jax.numpy as jnp
from jax.experimental import pallas as pl
from jax.experimental.pallas import tpu as pltpu

_EPS = 1e-8                      # matches nn.CosineSimilarity(dim=1, eps=1e-8)
_MIN_PALLAS_BYTES = 64 * 1024    # below this, fused XLA beats kernel launch overhead


def _round_up(x, m):
    return ((x + m - 1) // m) * m


@functools.lru_cache(maxsize=None)
def _vmem_budget_and_limit():
    """Per-generation byte budget for live kernel blocks + explicit VMEM limit."""
    try:
        cap = int(pltpu.get_tpu_info().vmem_capacity_bytes)
    except Exception:
        cap = 64 * 1024 * 1024   # conservative fallback (v7x per-TensorCore VMEM)
    cap = max(cap, 32 * 1024 * 1024)
    # Leave ample headroom for Mosaic internal scratch so full double-buffering
    # is preserved: 128 MiB chips -> ~56 MiB budget / ~90 MiB limit,
    # 64 MiB (v7x per TC) -> ~28 MiB budget / ~45 MiB limit.
    budget = min(int(cap * 0.45), 56 * 1024 * 1024)
    limit = min(int(cap * 0.70), 90 * 1024 * 1024)
    limit = max(limit, budget + 8 * 1024 * 1024)
    return budget, limit


def _choose_tile(n_rows, n_cols, in_itemsize):
    budget, limit = _vmem_budget_and_limit()
    in_bytes = 2 * 2 * n_cols * in_itemsize   # 2 inputs x double-buffered (tm, D) blocks
    tmp_bytes = 3 * n_cols * 4                 # f32 upcast copies + one product temporary
    vec_bytes = 10 * 512                       # (tm,1) f32 row vectors (dot/sa/sb/cos/...), lane-padded
    out_bytes = 2 * 128 * 4                    # (tm,1) cosine output block, x2 buffers, lane-padded
    per_row = in_bytes + tmp_bytes + vec_bytes + out_bytes
    tm = max(8, (budget // per_row) // 8 * 8)
    tm = min(tm, _round_up(n_rows, 8))
    if n_rows >= 16:
        # Guarantee >= 2 row tiles so the "parallel" axis can use both v7x cores.
        tm = min(tm, _round_up(-(-n_rows // 2), 8))
    return tm, limit


def _row_kernel(a_ref, b_ref, cos_ref, part_ref, *, n_rows):
    tm = a_ref.shape[0]
    a = a_ref[...].astype(jnp.float32)
    b = b_ref[...].astype(jnp.float32)
    dot = jnp.sum(a * b, axis=1, keepdims=True)   # (tm, 1)
    sa = jnp.sum(a * a, axis=1, keepdims=True)    # (tm, 1)
    sb = jnp.sum(b * b, axis=1, keepdims=True)    # (tm, 1)

    # Per-row cosine, torch semantics (denominator clamped by eps).  Use
    # sqrt(sa)*sqrt(sb) rather than sqrt(sa*sb) to avoid f32 overflow.
    denom = jnp.maximum(jnp.sqrt(sa) * jnp.sqrt(sb), _EPS)
    cos_ref[...] = dot / denom

    # Per-tile partial sums feeding the folded Frobenius-normalized MSE.  The
    # last (partial) tile reads unspecified rows past n_rows -> mask them.
    row = jax.lax.broadcasted_iota(jnp.int32, (tm, 1), 0)
    valid = (pl.program_id(0) * tm + row) < n_rows
    pdot = jnp.sum(jnp.where(valid, dot, 0.0))
    psa = jnp.sum(jnp.where(valid, sa, 0.0))
    psb = jnp.sum(jnp.where(valid, sb, 0.0))
    lane = jax.lax.broadcasted_iota(jnp.int32, part_ref.shape, 2)   # (1, 1, 3)
    part_ref[...] = jnp.where(lane == 0, pdot, jnp.where(lane == 1, psa, psb))


def _cosine_l2_loss_xla(first, second):
    """Fused pure-XLA path for tiny layers (identical math)."""
    a = first.astype(jnp.float32)
    b = second.astype(jnp.float32)
    n, d = a.shape
    dot = jnp.sum(a * b, axis=1)
    sa = jnp.sum(a * a, axis=1)
    sb = jnp.sum(b * b, axis=1)
    cos = dot / jnp.maximum(jnp.sqrt(sa) * jnp.sqrt(sb), _EPS)
    mse = (2.0 - 2.0 * jnp.sum(dot)
           / (jnp.sqrt(jnp.sum(sa)) * jnp.sqrt(jnp.sum(sb)))) / (n * d)
    return cos - mse


@jax.jit
def cosine_l2_loss(first, second):
    """first, second: (N, D). Returns (N,) f32 = cosine(dim=1) - MSE(L2Norm)."""
    assert first.shape == second.shape and first.ndim == 2
    n, d = first.shape
    itemsize = jnp.dtype(first.dtype).itemsize
    if n * d * itemsize < _MIN_PALLAS_BYTES:
        return _cosine_l2_loss_xla(first, second)

    tm, vmem_limit = _choose_tile(n, d, itemsize)
    num_tiles = pl.cdiv(n, tm)

    cos, partials = pl.pallas_call(
        functools.partial(_row_kernel, n_rows=n),
        out_shape=(
            jax.ShapeDtypeStruct((n, 1), jnp.float32),
            jax.ShapeDtypeStruct((num_tiles, 1, 3), jnp.float32),
        ),
        grid=(num_tiles,),
        in_specs=[
            pl.BlockSpec((tm, d), lambda i: (i, 0)),
            pl.BlockSpec((tm, d), lambda i: (i, 0)),
        ],
        out_specs=(
            pl.BlockSpec((tm, 1), lambda i: (i, 0)),
            pl.BlockSpec((1, 1, 3), lambda i: (i, 0, 0)),
        ),
        compiler_params=pltpu.CompilerParams(
            dimension_semantics=("parallel",),
            vmem_limit_bytes=vmem_limit,
        ),
    )(first, second)

    totals = jnp.sum(partials, axis=(0, 1))        # [sum(a.b), ||a||_F^2, ||b||_F^2]
    # MSE of Frobenius-normalized tensors, folded algebraically.  Like the
    # PyTorch reference there is no eps guard on the Frobenius norms.
    mse = (2.0 - 2.0 * totals[0]
           / (jnp.sqrt(totals[1]) * jnp.sqrt(totals[2]))) / (n * d)
    return cos[:, 0] - mse


class SimilarityLayerwiseWrapper:
    """JAX/Pallas equivalent of the PyTorch SimilarityLayerwiseWrapper.forward."""

    def __init__(self, feature_layers, feature_layers_weights, loss):
        self.layers = feature_layers
        self.layer_weights = feature_layers_weights
        self.loss = loss

    def __call__(self, first_features, second_features):
        if isinstance(first_features, (list, tuple)) and isinstance(
            second_features, (list, tuple)
        ):
            total = 0.0
            for layer, weight in zip(self.layers, self.layer_weights):
                total = total + self.loss(
                    first_features[layer], second_features[layer]
                ) * weight
            return total
        return self.loss(first_features, second_features)


# ----------------------------- pure-JAX reference -----------------------------

def _reference_loss(a, b):
    a = a.astype(jnp.float32)
    b = b.astype(jnp.float32)
    dot = jnp.sum(a * b, axis=1)
    na = jnp.sqrt(jnp.sum(a * a, axis=1))
    nb = jnp.sqrt(jnp.sum(b * b, axis=1))
    cos = dot / jnp.maximum(na * nb, _EPS)
    an = a / jnp.linalg.norm(a)
    bn = b / jnp.linalg.norm(b)
    mse = jnp.mean((an - bn) ** 2)
    return cos - mse


def _reference_wrapper(firsts, seconds, layers, weights):
    loss = 0.0
    for layer, w in zip(layers, weights):
        loss = loss + _reference_loss(firsts[layer], seconds[layer]) * w
    return loss


if __name__ == "__main__":
    key = jax.random.PRNGKey(0)
    N = 72                                   # not a multiple of the tile -> exercises masking
    layer_specs = [(2048, jnp.float32),      # Pallas path, f32
                   (1024, jnp.bfloat16),     # Pallas path, bf16 (in-kernel upcast)
                   (32, jnp.float32)]        # tiny layer -> fused XLA fallback
    layers = [0, 1, 2]
    weights = [1.0, 0.5, 0.25]

    firsts, seconds = [], []
    for d, dt in layer_specs:
        key, k1, k2 = jax.random.split(key, 3)
        firsts.append(jax.random.normal(k1, (N, d), dtype=dt))
        seconds.append(jax.random.normal(k2, (N, d), dtype=dt))

    wrapper = SimilarityLayerwiseWrapper(layers, weights, cosine_l2_loss)

    # List path (layer-wise weighted sum).
    out = jax.block_until_ready(wrapper(firsts, seconds))
    ref = _reference_wrapper(firsts, seconds, layers, weights)
    assert out.shape == (N,)
    assert jnp.allclose(out, ref, atol=2e-5, rtol=1e-4), (out, ref)

    # Single-tensor path.
    out_single = jax.block_until_ready(wrapper(firsts[0], seconds[0]))
    ref_single = _reference_loss(firsts[0], seconds[0])
    assert jnp.allclose(out_single, ref_single, atol=2e-5, rtol=1e-4)

    print("KERNEL_OK")
</pallas_src>

<mosaic_0001>
module attributes {stable_mosaic.version = 11 : i64} {
  func.func @_row_kernel(%arg0: i32, %arg1: memref<40x2048xf32, #tpu.memory_space<vmem>>, %arg2: memref<40x2048xf32, #tpu.memory_space<vmem>>, %arg3: memref<40x1xf32, #tpu.memory_space<vmem>>, %arg4: memref<1x1x3xf32, #tpu.memory_space<vmem>>) attributes {dimension_semantics = [#tpu.dimension_semantics<parallel>], iteration_bounds = array<i64: 2>, scalar_prefetch = 0 : i64, scratch_operands = 0 : i64, tpu.core_type = #tpu.core_type<tc>, window_params = [{transform_indices = @transform_0, window_bounds = array<i64: 40, 2048>}, {transform_indices = @transform_1, window_bounds = array<i64: 40, 2048>}, {transform_indices = @transform_2, window_bounds = array<i64: 40, 1>}, {transform_indices = @transform_3, window_bounds = array<i64: 1, 1, 3>}]} {
    %c0 = arith.constant 0 : index
    %c0_0 = arith.constant 0 : index
    %0 = vector.load %arg1[%c0, %c0_0] : memref<40x2048xf32, #tpu.memory_space<vmem>>, vector<40x2048xf32>
    %c0_1 = arith.constant 0 : index
    %c0_2 = arith.constant 0 : index
    %1 = vector.load %arg2[%c0_1, %c0_2] : memref<40x2048xf32, #tpu.memory_space<vmem>>, vector<40x2048xf32>
    %2 = arith.mulf %0, %1 : vector<40x2048xf32>
    %cst = arith.constant dense<0.000000e+00> : vector<40xf32>
    %3 = vector.multi_reduction <add>, %2, %cst [1] : vector<40x2048xf32> to vector<40xf32>
    %4 = vector.shape_cast %3 : vector<40xf32> to vector<40x1xf32>
    %5 = arith.mulf %0, %0 : vector<40x2048xf32>
    %cst_3 = arith.constant dense<0.000000e+00> : vector<40xf32>
    %6 = vector.multi_reduction <add>, %5, %cst_3 [1] : vector<40x2048xf32> to vector<40xf32>
    %7 = vector.shape_cast %6 : vector<40xf32> to vector<40x1xf32>
    %8 = arith.mulf %1, %1 : vector<40x2048xf32>
    %cst_4 = arith.constant dense<0.000000e+00> : vector<40xf32>
    %9 = vector.multi_reduction <add>, %8, %cst_4 [1] : vector<40x2048xf32> to vector<40xf32>
    %10 = vector.shape_cast %9 : vector<40xf32> to vector<40x1xf32>
    %11 = math.sqrt %7 : vector<40x1xf32>
    %12 = math.sqrt %10 : vector<40x1xf32>
    %13 = arith.mulf %11, %12 : vector<40x1xf32>
    %cst_5 = arith.constant 9.99999993E-9 : f32
    %14 = vector.broadcast %cst_5 : f32 to vector<40x1xf32>
    %15 = arith.maximumf %13, %14 : vector<40x1xf32>
    %16 = arith.divf %4, %15 : vector<40x1xf32>
    %c0_6 = arith.constant 0 : index
    %c0_7 = arith.constant 0 : index
    %17 = vector.load %arg3[%c0_6, %c0_7] : memref<40x1xf32, #tpu.memory_space<vmem>>, vector<40x1xf32>
    tpu.vector_store %arg3[%c0_6, %c0_7], %16 {strides = array<i32>} : memref<40x1xf32, #tpu.memory_space<vmem>>, vector<40x1xf32>,
    %18 = tpu.iota {dimensions = array<i32: 0>} : vector<40x1xi32>
    %c40_i32 = arith.constant 40 : i32
    %19 = arith.muli %arg0, %c40_i32 : i32
    %20 = vector.broadcast %19 : i32 to vector<40x1xi32>
    %21 = arith.addi %20, %18 : vector<40x1xi32>
    %c72_i32 = arith.constant 72 : i32
    %22 = vector.broadcast %c72_i32 : i32 to vector<40x1xi32>
    %23 = arith.cmpi slt, %21, %22 : vector<40x1xi32>
    %cst_8 = arith.constant 0.000000e+00 : f32
    %24 = vector.broadcast %cst_8 : f32 to vector<40x1xf32>
    %25 = arith.select %23, %4, %24 : vector<40x1xi1>, vector<40x1xf32>
    %26 = vector.shape_cast %25 : vector<40x1xf32> to vector<1x40x1xf32>
    %cst_9 = arith.constant dense<0.000000e+00> : vector<1xf32>
    %27 = vector.multi_reduction <add>, %26, %cst_9 [1, 2] : vector<1x40x1xf32> to vector<1xf32>
    %28 = vector.shape_cast %27 : vector<1xf32> to vector<1x1x1xf32>
    %29 = vector.extract %28[0, 0, 0] : f32 from vector<1x1x1xf32>
    %cst_10 = arith.constant 0.000000e+00 : f32
    %30 = vector.broadcast %cst_10 : f32 to vector<40x1xf32>
    %31 = arith.select %23, %7, %30 : vector<40x1xi1>, vector<40x1xf32>
    %32 = vector.shape_cast %31 : vector<40x1xf32> to vector<1x40x1xf32>
    %cst_11 = arith.constant dense<0.000000e+00> : vector<1xf32>
    %33 = vector.multi_reduction <add>, %32, %cst_11 [1, 2] : vector<1x40x1xf32> to vector<1xf32>
    %34 = vector.shape_cast %33 : vector<1xf32> to vector<1x1x1xf32>
    %35 = vector.extract %34[0, 0, 0] : f32 from vector<1x1x1xf32>
    %cst_12 = arith.constant 0.000000e+00 : f32
    %36 = vector.broadcast %cst_12 : f32 to vector<40x1xf32>
    %37 = arith.select %23, %10, %36 : vector<40x1xi1>, vector<40x1xf32>
    %38 = vector.shape_cast %37 : vector<40x1xf32> to vector<1x40x1xf32>
    %cst_13 = arith.constant dense<0.000000e+00> : vector<1xf32>
    %39 = vector.multi_reduction <add>, %38, %cst_13 [1, 2] : vector<1x40x1xf32> to vector<1xf32>
    %40 = vector.shape_cast %39 : vector<1xf32> to vector<1x1x1xf32>
    %41 = vector.extract %40[0, 0, 0] : f32 from vector<1x1x1xf32>
    %42 = tpu.iota {dimensions = array<i32: 2>} : vector<1x1x3xi32>
    %c0_i32 = arith.constant 0 : i32
    %43 = vector.broadcast %c0_i32 : i32 to vector<1x1x3xi32>
    %44 = arith.cmpi eq, %42, %43 : vector<1x1x3xi32>
    %c1_i32 = arith.constant 1 : i32
    %45 = vector.broadcast %c1_i32 : i32 to vector<1x1x3xi32>
    %46 = arith.cmpi eq, %42, %45 : vector<1x1x3xi32>
    %47 = vector.broadcast %35 : f32 to vector<1x1x3xf32>
    %48 = vector.broadcast %41 : f32 to vector<1x1x3xf32>
    %49 = arith.select %46, %47, %48 : vector<1x1x3xi1>, vector<1x1x3xf32>
    %50 = vector.broadcast %29 : f32 to vector<1x1x3xf32>
    %51 = arith.select %44, %50, %49 : vector<1x1x3xi1>, vector<1x1x3xf32>
    %c0_14 = arith.constant 0 : index
    %c0_15 = arith.constant 0 : index
    %c0_16 = arith.constant 0 : index
    %52 = vector.load %arg4[%c0_14, %c0_15, %c0_16] : memref<1x1x3xf32, #tpu.memory_space<vmem>>, vector<1x1x3xf32>
    tpu.vector_store %arg4[%c0_14, %c0_15, %c0_16], %51 {strides = array<i32>} : memref<1x1x3xf32, #tpu.memory_space<vmem>>, vector<1x1x3xf32>,
    return
  }
  func.func @transform_0(%arg0: i32) -> (i32, i32) {
    %c0_i32 = arith.constant 0 : i32
    %c0_i32_0 = arith.constant 0 : i32
    return %arg0, %c0_i32 : i32, i32
  }
  func.func @transform_1(%arg0: i32) -> (i32, i32) {
    %c0_i32 = arith.constant 0 : i32
    %c0_i32_0 = arith.constant 0 : i32
    return %arg0, %c0_i32 : i32, i32
  }
  func.func @transform_2(%arg0: i32) -> (i32, i32) {
    %c0_i32 = arith.constant 0 : i32
    %c0_i32_0 = arith.constant 0 : i32
    return %arg0, %c0_i32 : i32, i32
  }
  func.func @transform_3(%arg0: i32) -> (i32, i32, i32) {
    %c0_i32 = arith.constant 0 : i32
    %c0_i32_0 = arith.constant 0 : i32
    %c0_i32_1 = arith.constant 0 : i32
    return %arg0, %c0_i32, %c0_i32_0 : i32, i32, i32
  }
}

</mosaic_0001>

<llo_original>
// kernel: cosine_l2_loss.1
$region0: #{cosine_l2_loss.1}
  #allocation0 [shape = 'u32[]', space=smem, size = 0x4, offset = 0x4, fixed_abs, tag = 'smem constant byte address 0x4 - core index']
  #allocation1 [shape = 'u32[144,128]{1,0:T(1,128)}', space=vmem, size = 0x12000, scoped, tag = 'internal scratch']
  %s0 = inlined_call_operand.hbm [shape: f32[72,2048], index: 0, kind: input, shape index: {}]
  %s1 = inlined_call_operand.hbm [shape: f32[72,2048], index: 1, kind: input, shape index: {}]
  %s2 = inlined_call_operand.vmem [shape: f32[72,1], index: 2, kind: output, shape index: {0}]
  %s3 = inlined_call_operand.vmem [shape: f32[2,1,3], index: 3, kind: output, shape index: {1}]
  %4 = xla_tuple %s2, %s3
  %s5 = sld [smem:[#allocation0]]
  $region105: #{cosine_l2_loss.1} parent=0
    _
  %s7 = ssub.s32 1, %s5
  %s8 = scalar_select 0, %s7, %s5
  $region1: #{cosine_l2_loss.1} parent=0
    #allocation2 [shape = 'u8[655360]{0}', space=vmem, size = 0xa0000, scoped, tag = 'input window, operand 0']
    #allocation3 [shape = 's32[2]{0}', space=sflag, size = 0x8, scoped, tag = 'scoped memory for cosine_l2_loss.1']
    #allocation4 [shape = 'u8[655360]{0}', space=vmem, size = 0xa0000, scoped, tag = 'input window, operand 1']
    #allocation5 [shape = 's32[2]{0}', space=sflag, size = 0x8, scoped, tag = 'scoped memory for cosine_l2_loss.1']
    #allocation6 [shape = 'u8[40960]{0}', space=vmem, size = 0xa000, scoped, tag = 'output window, operand 0']
    %9 = vsyncpa [#allocation3], 0
    %s10 = scalar_lea.sflag [#allocation3], 1
    %11 = vsyncpa %s10, 0
    %12 = vsyncpa [#allocation5], 0
    %s13 = scalar_lea.sflag [#allocation5], 1
    %14 = vsyncpa %s13, 0
    loop: start=0, step=1, limit=4
    $region2: #{cosine_l2_loss.1} parent=1 // loop_pre_header
      _
    $region3: #{cosine_l2_loss.1} parent=1 // loop_header
      %s16 = sphi 0, %s20
      %p17 = scmp.ge.s32.totalorder %s16, 4
      %s26 = sphi 0, %s28
      %s29 = sphi 0, %s26
      %s30 = sphi 0, %s29
      %s46 = sphi 0, %s30
      %s52 = sphi 0, %s54
      %s55 = sphi 0, %s52
      %s56 = sphi 0, %s55
      %s72 = sphi 0, %s56
      %s78 = sphi 0, %s80
      %s81 = sphi 0, %s78
      %s82 = sphi 0, %s81
      %s98 = sphi 0, %s82
      %s104 = sphi 0, %s106
      %s107 = sphi 0, %s104
      %s108 = sphi 0, %s107
      %s124 = sphi 0, %s108
    $region4: #{cosine_l2_loss.1} parent=1 // loop_header_branch
      %19 = sbr.rel (%p17) target = $region8
    $region5: #{cosine_l2_loss.1} parent=1 // loop_body
      %s21 = ssub.s32 %s16, 1
      %s22 = ssub.s32 %s16, 2
      %s23 = sadd.s32 %s16, 1
      %s24 = ssub.s32 %s16, %s23
      %p25 = scmp.eq.s32.totalorder %s24, 0
      %s27 = sadd.s32 %s26, 1
      %s28 = scalar_select %p25, %s26, %s27
      %p31 = pneg %p25
      %p32 = scmp.eq.s32.totalorder %s16, 1
      %p33 = por %p31, %p32
      %p34 = scmp.ne.s32.totalorder %s26, %s29
      %p35 = scmp.eq.s32.totalorder %s16, 0
      %p36 = por %p34, %p35
      %p37 = scmp.ne.s32.totalorder %s26, %s29
      %p38 = scmp.eq.s32.totalorder %s21, 1
      %p39 = por %p37, %p38
      %p40 = scmp.ne.s32.totalorder %s29, %s30
      %p41 = scmp.eq.s32.totalorder %s21, 0
      %p42 = por %p40, %p41
      %p43 = scmp.ne.s32.totalorder %s29, %s30
      %p44 = scmp.eq.s32.totalorder %s22, 1
      %p45 = por %p43, %p44
      %p47 = scmp.ne.s32.totalorder %s30, %s46
      %p48 = scmp.eq.s32.totalorder %s22, 0
      %p49 = por %p47, %p48
      %s50 = ssub.s32 %s16, %s23
      %p51 = scmp.eq.s32.totalorder %s50, 0
      %s53 = sadd.s32 %s52, 1
      %s54 = scalar_select %p51, %s52, %s53
      %p57 = pneg %p51
      %p58 = scmp.eq.s32.totalorder %s16, 1
      %p59 = por %p57, %p58
      %p60 = scmp.ne.s32.totalorder %s52, %s55
      %p61 = scmp.eq.s32.totalorder %s16, 0
      %p62 = por %p60, %p61
      %p63 = scmp.ne.s32.totalorder %s52, %s55
      %p64 = scmp.eq.s32.totalorder %s21, 1
      %p65 = por %p63, %p64
      %p66 = scmp.ne.s32.totalorder %s55, %s56
      %p67 = scmp.eq.s32.totalorder %s21, 0
      %p68 = por %p66, %p67
      %p69 = scmp.ne.s32.totalorder %s55, %s56
      %p70 = scmp.eq.s32.totalorder %s22, 1
      %p71 = por %p69, %p70
      %p73 = scmp.ne.s32.totalorder %s56, %s72
      %p74 = scmp.eq.s32.totalorder %s22, 0
      %p75 = por %p73, %p74
      %s76 = ssub.s32 %s16, %s23
      %p77 = scmp.eq.s32.totalorder %s76, 0
      %s79 = sadd.s32 %s78, 1
      %s80 = scalar_select %p77, %s78, %s79
      %p83 = pneg %p77
      %p84 = scmp.eq.s32.totalorder %s16, 1
      %p85 = por %p83, %p84
      %p86 = scmp.ne.s32.totalorder %s78, %s81
      %p87 = scmp.eq.s32.totalorder %s16, 0
      %p88 = por %p86, %p87
      %p89 = scmp.ne.s32.totalorder %s78, %s81
      %p90 = scmp.eq.s32.totalorder %s21, 1
      %p91 = por %p89, %p90
      %p92 = scmp.ne.s32.totalorder %s81, %s82
      %p93 = scmp.eq.s32.totalorder %s21, 0
      %p94 = por %p92, %p93
      %p95 = scmp.ne.s32.totalorder %s81, %s82
      %p96 = scmp.eq.s32.totalorder %s22, 1
      %p97 = por %p95, %p96
      %p99 = scmp.ne.s32.totalorder %s82, %s98
      %p100 = scmp.eq.s32.totalorder %s22, 0
      %p101 = por %p99, %p100
      %s102 = ssub.s32 %s16, %s23
      %p103 = scmp.eq.s32.totalorder %s102, 0
      %s105 = sadd.s32 %s104, 1
      %s106 = scalar_select %p103, %s104, %s105
      %p109 = pneg %p103
      %p110 = scmp.eq.s32.totalorder %s16, 1
      %p111 = por %p109, %p110
      %p112 = scmp.ne.s32.totalorder %s104, %s107
      %p113 = scmp.eq.s32.totalorder %s16, 0
      %p114 = por %p112, %p113
      %p115 = scmp.ne.s32.totalorder %s104, %s107
      %p116 = scmp.eq.s32.totalorder %s21, 1
      %p117 = por %p115, %p116
      %p118 = scmp.ne.s32.totalorder %s107, %s108
      %p119 = scmp.eq.s32.totalorder %s21, 0
      %p120 = por %p118, %p119
      %p121 = scmp.ne.s32.totalorder %s107, %s108
      %p122 = scmp.eq.s32.totalorder %s22, 1
      %p123 = por %p121, %p122
      %p125 = scmp.ne.s32.totalorder %s108, %s124
      %p126 = scmp.eq.s32.totalorder %s22, 0
      %p127 = por %p125, %p126
      %p128 = scmp.le.s32.totalorder 1, %s16
      %p129 = scmp.lt.s32.totalorder %s16, 3
      %p130 = pnand %p128, %p129
      %p131 = pneg %p130
      // Predicated region
      $region9: #{cosine_l2_loss.1} parent=5 // pred_check
        _
      $region10: #{cosine_l2_loss.1} parent=5 // pred_check_branch
        %133 = sbr.rel (%p130) target = $region12
      $region11: #{cosine_l2_loss.1} parent=5 // pred_region
        %s134 = ssub.s32 %s16, 1
      $region12: #{cosine_l2_loss.1} parent=5 // pred_fallthru
        _
      %p135 = scmp.lt.s32.totalorder %s16, 2
      // Predicated region
      $region13: #{cosine_l2_loss.1} parent=5 // pred_check
        %p136 = pneg %p135
      $region14: #{cosine_l2_loss.1} parent=5 // pred_check_branch
        %138 = sbr.rel (%p136) target = $region16
      $region15: #{cosine_l2_loss.1} parent=5 // pred_region
        // Predicated region
        $region17: #{cosine_l2_loss.1} parent=15 // pred_check
          %p139 = pneg %p36
        $region18: #{cosine_l2_loss.1} parent=15 // pred_check_branch
          %141 = sbr.rel (%p139) target = $region20
        $region19: #{cosine_l2_loss.1} parent=15 // pred_region
          %s142 = sand.u32 %s26, 1
          %s143 = scalar_lea.sflag [#allocation3], %s142
          %s144 = sand.u32 %s26, 1
          %s145 = smul.addr %s144, 640
          %s146 = scalar_lea.vmem [#allocation2], %s145
          %s147 = smul.u32 5, %s16
          %s148 = ssub.s32 9, %s147
          %p149 = scmp.lt.s32.totalorder %s148, 5
          %s150 = scalar_select %p149, %s148, 5
          %s151 = smul.u32 128, %s150
          %s152 = smul.u32 %s151, 16
          %s154 = ssub.s32 10240, %s152
          %155 = vsyncadd %s143, %s154
          %p156 = scmp.ne.s32.totalorder 0, %s152
          %s157 = smul.addr %s147, 16
          %s158 = smul.addr %s157, 128
          %s159 = scalar_lea.hbm %s0, %s158
          %s160 = smul.u32 128, %s150
          %s161 = sshll.u32 %s146, 4
          %s162 = int_to_ptr.vmem [resolvable:$true] %s161
          %s163 = sshll.u32 %s160, 4
          %167 = dma.hbm_to_vmem [thread:$0]  (%p156), %s159, %s163, %s162, %s143, 2048, 2048, 128
        $region20: #{cosine_l2_loss.1} parent=15 // pred_fallthru
          _
        // Predicated region
        $region21: #{cosine_l2_loss.1} parent=15 // pred_check
          %p168 = pneg %p62
        $region22: #{cosine_l2_loss.1} parent=15 // pred_check_branch
          %170 = sbr.rel (%p168) target = $region24
        $region23: #{cosine_l2_loss.1} parent=15 // pred_region
          %s171 = sand.u32 %s52, 1
          %s172 = scalar_lea.sflag [#allocation5], %s171
          %s173 = sand.u32 %s52, 1
          %s174 = smul.addr %s173, 640
          %s175 = scalar_lea.vmem [#allocation4], %s174
          %s176 = smul.u32 5, %s16
          %s177 = ssub.s32 9, %s176
          %p178 = scmp.lt.s32.totalorder %s177, 5
          %s179 = scalar_select %p178, %s177, 5
          %s180 = smul.u32 128, %s179
          %s181 = smul.u32 %s180, 16
          %s183 = ssub.s32 10240, %s181
          %184 = vsyncadd %s172, %s183
          %p185 = scmp.ne.s32.totalorder 0, %s181
          %s186 = smul.addr %s176, 16
          %s187 = smul.addr %s186, 128
          %s188 = scalar_lea.hbm %s1, %s187
          %s189 = smul.u32 128, %s179
          %s190 = sshll.u32 %s175, 4
          %s191 = int_to_ptr.vmem [resolvable:$true] %s190
          %s192 = sshll.u32 %s189, 4
          %196 = dma.hbm_to_vmem [thread:$0]  (%p185), %s188, %s192, %s191, %s172, 2048, 2048, 128
        $region24: #{cosine_l2_loss.1} parent=15 // pred_fallthru
          _
      $region16: #{cosine_l2_loss.1} parent=5 // pred_fallthru
        _
      %p197 = scmp.le.s32.totalorder 1, %s16
      %p198 = scmp.lt.s32.totalorder %s16, 3
      %p199 = pnand %p197, %p198
      %p200 = pneg %p199
      // Predicated region
      $region25: #{cosine_l2_loss.1} parent=5 // pred_check
        _
      $region26: #{cosine_l2_loss.1} parent=5 // pred_check_branch
        %202 = sbr.rel (%p199) target = $region28
      $region27: #{cosine_l2_loss.1} parent=5 // pred_region
        %s203 = ssub.s32 %s16, 1
        %s204 = sand.u32 %s29, 1
        %s205 = scalar_lea.sflag [#allocation3], %s204
        %s206 = sand.u32 %s29, 1
        %s207 = smul.addr %s206, 640
        %s208 = scalar_lea.vmem [#allocation2], %s207
        // Predicated region
        $region29: #{cosine_l2_loss.1} parent=27 // pred_check
          %p209 = pneg %p42
        $region30: #{cosine_l2_loss.1} parent=27 // pred_check_branch
          %211 = sbr.rel (%p209) target = $region32
        $region31: #{cosine_l2_loss.1} parent=27 // pred_region
          %212 = dma.done %s205, 10240
        $region32: #{cosine_l2_loss.1} parent=27 // pred_fallthru
          _
        %s213 = sand.u32 %s55, 1
        %s214 = scalar_lea.sflag [#allocation5], %s213
        %s215 = sand.u32 %s55, 1
        %s216 = smul.addr %s215, 640
        %s217 = scalar_lea.vmem [#allocation4], %s216
        // Predicated region
        $region33: #{cosine_l2_loss.1} parent=27 // pred_check
          %p218 = pneg %p68
        $region34: #{cosine_l2_loss.1} parent=27 // pred_check_branch
          %220 = sbr.rel (%p218) target = $region36
        $region35: #{cosine_l2_loss.1} parent=27 // pred_region
          %221 = dma.done %s214, 10240
        $region36: #{cosine_l2_loss.1} parent=27 // pred_fallthru
          _
        %s222 = sand.u32 %s29, 1
        %s223 = scalar_lea.sflag [#allocation3], %s222
        %s224 = sand.u32 %s29, 1
        %s225 = smul.addr %s224, 640
        %s226 = scalar_lea.vmem [#allocation2], %s225
        %p227 = pneg %p42
        %p228 = pneg %p39
        %s229 = sand.u32 %s55, 1
        %s230 = scalar_lea.sflag [#allocation5], %s229
        %s231 = sand.u32 %s55, 1
        %s232 = smul.addr %s231, 640
        %s233 = scalar_lea.vmem [#allocation4], %s232
        %p234 = pneg %p68
        %p235 = pneg %p65
        %p236 = pneg %p94
        %p237 = pneg %p91
        %s238 = sand.u32 %s81, 1
        %s239 = sand.u32 %s81, 1
        %s240 = smul.addr %s239, 40
        %s241 = scalar_lea.vmem [#allocation6], %s240
        %p242 = pneg %p120
        %p243 = pneg %p117
        %p244 = scmp.lt.s32.totalorder %s21, 1
        %s245 = scalar_select %p244, %s21, 1
        %s246 = scalar_lea.vmem %s3, %s245
        %s247 = smul.u32 5, %s21
        %s248 = ssub.s32 9, %s247
        %p249 = scmp.lt.s32.totalorder %s248, 5
        %s250 = scalar_select %p249, %s248, 5
        %s251 = smul.u32 128, %s250
        %s252 = smul.u32 %s251, 16
        %s253 = smul.u32 5, %s21
        %s254 = ssub.s32 9, %s253
        %p255 = scmp.lt.s32.totalorder %s254, 5
        %s256 = scalar_select %p255, %s254, 5
        %s257 = smul.u32 128, %s256
        %s258 = smul.u32 %s257, 16
        %s259 = smul.u32 5, %s21
        %s260 = ssub.s32 9, %s259
        %p261 = scmp.lt.s32.totalorder %s260, 5
        %s262 = scalar_select %p261, %s260, 5
        %s263 = smul.u32 128, %s262
        %p264 = scmp.lt.s32.totalorder %s21, 1
        %s265 = scalar_select %p264, %s21, 1
        %s266 = scalar_lea.vmem %s3, %s265
        %v267 = vld [vmem:[%s208] sm:$0xff]
        %v268 = vld [vmem:[%s208 + $0x8] sm:$0xff]
        %v269 = vld [vmem:[%s208 + $0x10] sm:$0xff]
        %v270 = vld [vmem:[%s208 + $0x18] sm:$0xff]
        %v271 = vld [vmem:[%s208 + $0x20] sm:$0xff]
        %v272 = vld [vmem:[%s208 + $0x28] sm:$0xff]
        %v273 = vld [vmem:[%s208 + $0x30] sm:$0xff]
        %v274 = vld [vmem:[%s208 + $0x38] sm:$0xff]
        %v275 = vld [vmem:[%s208 + $0x40] sm:$0xff]
        %v276 = vld [vmem:[%s208 + $0x48] sm:$0xff]
        %v277 = vld [vmem:[%s208 + $0x50] sm:$0xff]
        %v278 = vld [vmem:[%s208 + $0x58] sm:$0xff]
        %v279 = vld [vmem:[%s208 + $0x60] sm:$0xff]
        %v280 = vld [vmem:[%s208 + $0x68] sm:$0xff]
        %v281 = vld [vmem:[%s208 + $0x70] sm:$0xff]
        %v282 = vld [vmem:[%s208 + $0x78] sm:$0xff]
        %v283 = vld [vmem:[%s208 + $0x80] sm:$0xff]
        %v284 = vld [vmem:[%s208 + $0x88] sm:$0xff]
        %v285 = vld [vmem:[%s208 + $0x90] sm:$0xff]
        %v286 = vld [vmem:[%s208 + $0x98] sm:$0xff]
        %v287 = vld [vmem:[%s208 + $0xa0] sm:$0xff]
        %v288 = vld [vmem:[%s208 + $0xa8] sm:$0xff]
        %v289 = vld [vmem:[%s208 + $0xb0] sm:$0xff]
        %v290 = vld [vmem:[%s208 + $0xb8] sm:$0xff]
        %v291 = vld [vmem:[%s208 + $0xc0] sm:$0xff]
        %v292 = vld [vmem:[%s208 + $0xc8] sm:$0xff]
        %v293 = vld [vmem:[%s208 + $0xd0] sm:$0xff]
        %v294 = vld [vmem:[%s208 + $0xd8] sm:$0xff]
        %v295 = vld [vmem:[%s208 + $0xe0] sm:$0xff]
        %v296 = vld [vmem:[%s208 + $0xe8] sm:$0xff]
        %v297 = vld [vmem:[%s208 + $0xf0] sm:$0xff]
        %v298 = vld [vmem:[%s208 + $0xf8] sm:$0xff]
        %v299 = vld [vmem:[%s208 + $0x100] sm:$0xff]
        %v300 = vld [vmem:[%s208 + $0x108] sm:$0xff]
        %v301 = vld [vmem:[%s208 + $0x110] sm:$0xff]
        %v302 = vld [vmem:[%s208 + $0x118] sm:$0xff]
        %v303 = vld [vmem:[%s208 + $0x120] sm:$0xff]
        %v304 = vld [vmem:[%s208 + $0x128] sm:$0xff]
        %v305 = vld [vmem:[%s208 + $0x130] sm:$0xff]
        %v306 = vld [vmem:[%s208 + $0x138] sm:$0xff]
        %v307 = vld [vmem:[%s208 + $0x140] sm:$0xff]
        %v308 = vld [vmem:[%s208 + $0x148] sm:$0xff]
        %v309 = vld [vmem:[%s208 + $0x150] sm:$0xff]
        %v310 = vld [vmem:[%s208 + $0x158] sm:$0xff]
        %v311 = vld [vmem:[%s208 + $0x160] sm:$0xff]
        %v312 = vld [vmem:[%s208 + $0x168] sm:$0xff]
        %v313 = vld [vmem:[%s208 + $0x170] sm:$0xff]
        %v314 = vld [vmem:[%s208 + $0x178] sm:$0xff]
        %v315 = vld [vmem:[%s208 + $0x180] sm:$0xff]
        %v316 = vld [vmem:[%s208 + $0x188] sm:$0xff]
        %v317 = vld [vmem:[%s208 + $0x190] sm:$0xff]
        %v318 = vld [vmem:[%s208 + $0x198] sm:$0xff]
        %v319 = vld [vmem:[%s208 + $0x1a0] sm:$0xff]
        %v320 = vld [vmem:[%s208 + $0x1a8] sm:$0xff]
        %v321 = vld [vmem:[%s208 + $0x1b0] sm:$0xff]
        %v322 = vld [vmem:[%s208 + $0x1b8] sm:$0xff]
        %v323 = vld [vmem:[%s208 + $0x1c0] sm:$0xff]
        %v324 = vld [vmem:[%s208 + $0x1c8] sm:$0xff]
        %v325 = vld [vmem:[%s208 + $0x1d0] sm:$0xff]
        %v326 = vld [vmem:[%s208 + $0x1d8] sm:$0xff]
        %v327 = vld [vmem:[%s208 + $0x1e0] sm:$0xff]
        %v328 = vld [vmem:[%s208 + $0x1e8] sm:$0xff]
        %v329 = vld [vmem:[%s208 + $0x1f0] sm:$0xff]
        %v330 = vld [vmem:[%s208 + $0x1f8] sm:$0xff]
        %v331 = vld [vmem:[%s208 + $0x200] sm:$0xff]
        %v332 = vld [vmem:[%s208 + $0x208] sm:$0xff]
        %v333 = vld [vmem:[%s208 + $0x210] sm:$0xff]
        %v334 = vld [vmem:[%s208 + $0x218] sm:$0xff]
        %v335 = vld [vmem:[%s208 + $0x220] sm:$0xff]
        %v336 = vld [vmem:[%s208 + $0x228] sm:$0xff]
        %v337 = vld [vmem:[%s208 + $0x230] sm:$0xff]
        %v338 = vld [vmem:[%s208 + $0x238] sm:$0xff]
        %v339 = vld [vmem:[%s208 + $0x240] sm:$0xff]
        %v340 = vld [vmem:[%s208 + $0x248] sm:$0xff]
        %v341 = vld [vmem:[%s208 + $0x250] sm:$0xff]
        %v342 = vld [vmem:[%s208 + $0x258] sm:$0xff]
        %v343 = vld [vmem:[%s208 + $0x260] sm:$0xff]
        %v344 = vld [vmem:[%s208 + $0x268] sm:$0xff]
        %v345 = vld [vmem:[%s208 + $0x270] sm:$0xff]
        %v346 = vld [vmem:[%s208 + $0x278] sm:$0xff]
        %v347 = vld [vmem:[%s217] sm:$0xff]
        %v348 = vld [vmem:[%s217 + $0x8] sm:$0xff]
        %v349 = vld [vmem:[%s217 + $0x10] sm:$0xff]
        %v350 = vld [vmem:[%s217 + $0x18] sm:$0xff]
        %v351 = vld [vmem:[%s217 + $0x20] sm:$0xff]
        %v352 = vld [vmem:[%s217 + $0x28] sm:$0xff]
        %v353 = vld [vmem:[%s217 + $0x30] sm:$0xff]
        %v354 = vld [vmem:[%s217 + $0x38] sm:$0xff]
        %v355 = vld [vmem:[%s217 + $0x40] sm:$0xff]
        %v356 = vld [vmem:[%s217 + $0x48] sm:$0xff]
        %v357 = vld [vmem:[%s217 + $0x50] sm:$0xff]
        %v358 = vld [vmem:[%s217 + $0x58] sm:$0xff]
        %v359 = vld [vmem:[%s217 + $0x60] sm:$0xff]
        %v360 = vld [vmem:[%s217 + $0x68] sm:$0xff]
        %v361 = vld [vmem:[%s217 + $0x70] sm:$0xff]
        %v362 = vld [vmem:[%s217 + $0x78] sm:$0xff]
        %v363 = vld [vmem:[%s217 + $0x80] sm:$0xff]
        %v364 = vld [vmem:[%s217 + $0x88] sm:$0xff]
        %v365 = vld [vmem:[%s217 + $0x90] sm:$0xff]
        %v366 = vld [vmem:[%s217 + $0x98] sm:$0xff]
        %v367 = vld [vmem:[%s217 + $0xa0] sm:$0xff]
        %v368 = vld [vmem:[%s217 + $0xa8] sm:$0xff]
        %v369 = vld [vmem:[%s217 + $0xb0] sm:$0xff]
        %v370 = vld [vmem:[%s217 + $0xb8] sm:$0xff]
        %v371 = vld [vmem:[%s217 + $0xc0] sm:$0xff]
        %v372 = vld [vmem:[%s217 + $0xc8] sm:$0xff]
        %v373 = vld [vmem:[%s217 + $0xd0] sm:$0xff]
        %v374 = vld [vmem:[%s217 + $0xd8] sm:$0xff]
        %v375 = vld [vmem:[%s217 + $0xe0] sm:$0xff]
        %v376 = vld [vmem:[%s217 + $0xe8] sm:$0xff]
        %v377 = vld [vmem:[%s217 + $0xf0] sm:$0xff]
        %v378 = vld [vmem:[%s217 + $0xf8] sm:$0xff]
        %v379 = vld [vmem:[%s217 + $0x100] sm:$0xff]
        %v380 = vld [vmem:[%s217 + $0x108] sm:$0xff]
        %v381 = vld [vmem:[%s217 + $0x110] sm:$0xff]
        %v382 = vld [vmem:[%s217 + $0x118] sm:$0xff]
        %v383 = vld [vmem:[%s217 + $0x120] sm:$0xff]
        %v384 = vld [vmem:[%s217 + $0x128] sm:$0xff]
        %v385 = vld [vmem:[%s217 + $0x130] sm:$0xff]
        %v386 = vld [vmem:[%s217 + $0x138] sm:$0xff]
        %v387 = vld [vmem:[%s217 + $0x140] sm:$0xff]
        %v388 = vld [vmem:[%s217 + $0x148] sm:$0xff]
        %v389 = vld [vmem:[%s217 + $0x150] sm:$0xff]
        %v390 = vld [vmem:[%s217 + $0x158] sm:$0xff]
        %v391 = vld [vmem:[%s217 + $0x160] sm:$0xff]
        %v392 = vld [vmem:[%s217 + $0x168] sm:$0xff]
        %v393 = vld [vmem:[%s217 + $0x170] sm:$0xff]
        %v394 = vld [vmem:[%s217 + $0x178] sm:$0xff]
        %v395 = vld [vmem:[%s217 + $0x180] sm:$0xff]
        %v396 = vld [vmem:[%s217 + $0x188] sm:$0xff]
        %v397 = vld [vmem:[%s217 + $0x190] sm:$0xff]
        %v398 = vld [vmem:[%s217 + $0x198] sm:$0xff]
        %v399 = vld [vmem:[%s217 + $0x1a0] sm:$0xff]
        %v400 = vld [vmem:[%s217 + $0x1a8] sm:$0xff]
        %v401 = vld [vmem:[%s217 + $0x1b0] sm:$0xff]
        %v402 = vld [vmem:[%s217 + $0x1b8] sm:$0xff]
        %v403 = vld [vmem:[%s217 + $0x1c0] sm:$0xff]
        %v404 = vld [vmem:[%s217 + $0x1c8] sm:$0xff]
        %v405 = vld [vmem:[%s217 + $0x1d0] sm:$0xff]
        %v406 = vld [vmem:[%s217 + $0x1d8] sm:$0xff]
        %v407 = vld [vmem:[%s217 + $0x1e0] sm:$0xff]
        %v408 = vld [vmem:[%s217 + $0x1e8] sm:$0xff]
        %v409 = vld [vmem:[%s217 + $0x1f0] sm:$0xff]
        %v410 = vld [vmem:[%s217 + $0x1f8] sm:$0xff]
        %v411 = vld [vmem:[%s217 + $0x200] sm:$0xff]
        %v412 = vld [vmem:[%s217 + $0x208] sm:$0xff]
        %v413 = vld [vmem:[%s217 + $0x210] sm:$0xff]
        %v414 = vld [vmem:[%s217 + $0x218] sm:$0xff]
        %v415 = vld [vmem:[%s217 + $0x220] sm:$0xff]
        %v416 = vld [vmem:[%s217 + $0x228] sm:$0xff]
        %v417 = vld [vmem:[%s217 + $0x230] sm:$0xff]
        %v418 = vld [vmem:[%s217 + $0x238] sm:$0xff]
        %v419 = vld [vmem:[%s217 + $0x240] sm:$0xff]
        %v420 = vld [vmem:[%s217 + $0x248] sm:$0xff]
        %v421 = vld [vmem:[%s217 + $0x250] sm:$0xff]
        %v422 = vld [vmem:[%s217 + $0x258] sm:$0xff]
        %v423 = vld [vmem:[%s217 + $0x260] sm:$0xff]
        %v424 = vld [vmem:[%s217 + $0x268] sm:$0xff]
        %v425 = vld [vmem:[%s217 + $0x270] sm:$0xff]
        %v426 = vld [vmem:[%s217 + $0x278] sm:$0xff]
        %v427 = vmul.f32 %v267, %v347
        %v428 = vmul.f32 %v268, %v348
        %v429 = vmul.f32 %v269, %v349
        %v430 = vmul.f32 %v270, %v350
        %v431 = vmul.f32 %v271, %v351
        %v432 = vmul.f32 %v272, %v352
        %v433 = vmul.f32 %v273, %v353
        %v434 = vmul.f32 %v274, %v354
        %v435 = vmul.f32 %v275, %v355
        %v436 = vmul.f32 %v276, %v356
        %v437 = vmul.f32 %v277, %v357
        %v438 = vmul.f32 %v278, %v358
        %v439 = vmul.f32 %v279, %v359
        %v440 = vmul.f32 %v280, %v360
        %v441 = vmul.f32 %v281, %v361
        %v442 = vmul.f32 %v282, %v362
        %v443 = vmul.f32 %v283, %v363
        %v444 = vmul.f32 %v284, %v364
        %v445 = vmul.f32 %v285, %v365
        %v446 = vmul.f32 %v286, %v366
        %v447 = vmul.f32 %v287, %v367
        %v448 = vmul.f32 %v288, %v368
        %v449 = vmul.f32 %v289, %v369
        %v450 = vmul.f32 %v290, %v370
        %v451 = vmul.f32 %v291, %v371
        %v452 = vmul.f32 %v292, %v372
        %v453 = vmul.f32 %v293, %v373
        %v454 = vmul.f32 %v294, %v374
        %v455 = vmul.f32 %v295, %v375
        %v456 = vmul.f32 %v296, %v376
        %v457 = vmul.f32 %v297, %v377
        %v458 = vmul.f32 %v298, %v378
        %v459 = vmul.f32 %v299, %v379
        %v460 = vmul.f32 %v300, %v380
        %v461 = vmul.f32 %v301, %v381
        %v462 = vmul.f32 %v302, %v382
        %v463 = vmul.f32 %v303, %v383
        %v464 = vmul.f32 %v304, %v384
        %v465 = vmul.f32 %v305, %v385
        %v466 = vmul.f32 %v306, %v386
        %v467 = vmul.f32 %v307, %v387
        %v468 = vmul.f32 %v308, %v388
        %v469 = vmul.f32 %v309, %v389
        %v470 = vmul.f32 %v310, %v390
        %v471 = vmul.f32 %v311, %v391
        %v472 = vmul.f32 %v312, %v392
        %v473 = vmul.f32 %v313, %v393
        %v474 = vmul.f32 %v314, %v394
        %v475 = vmul.f32 %v315, %v395
        %v476 = vmul.f32 %v316, %v396
        %v477 = vmul.f32 %v317, %v397
        %v478 = vmul.f32 %v318, %v398
        %v479 = vmul.f32 %v319, %v399
        %v480 = vmul.f32 %v320, %v400
        %v481 = vmul.f32 %v321, %v401
        %v482 = vmul.f32 %v322, %v402
        %v483 = vmul.f32 %v323, %v403
        %v484 = vmul.f32 %v324, %v404
        %v485 = vmul.f32 %v325, %v405
        %v486 = vmul.f32 %v326, %v406
        %v487 = vmul.f32 %v327, %v407
        %v488 = vmul.f32 %v328, %v408
        %v489 = vmul.f32 %v329, %v409
        %v490 = vmul.f32 %v330, %v410
        %v491 = vmul.f32 %v331, %v411
        %v492 = vmul.f32 %v332, %v412
        %v493 = vmul.f32 %v333, %v413
        %v494 = vmul.f32 %v334, %v414
        %v495 = vmul.f32 %v335, %v415
        %v496 = vmul.f32 %v336, %v416
        %v497 = vmul.f32 %v337, %v417
        %v498 = vmul.f32 %v338, %v418
        %v499 = vmul.f32 %v339, %v419
        %v500 = vmul.f32 %v340, %v420
        %v501 = vmul.f32 %v341, %v421
        %v502 = vmul.f32 %v342, %v422
        %v503 = vmul.f32 %v343, %v423
        %v504 = vmul.f32 %v344, %v424
        %v505 = vmul.f32 %v345, %v425
        %v506 = vmul.f32 %v346, %v426
        %v507 = vadd.f32 %v427, %v428
        %v508 = vadd.f32 %v507, %v429
        %v509 = vadd.f32 %v508, %v430
        %v510 = vadd.f32 %v509, %v431
        %v511 = vadd.f32 %v510, %v432
        %v512 = vadd.f32 %v511, %v433
        %v513 = vadd.f32 %v512, %v434
        %v514 = vadd.f32 %v513, %v435
        %v515 = vadd.f32 %v514, %v436
        %v516 = vadd.f32 %v515, %v437
        %v517 = vadd.f32 %v516, %v438
        %v518 = vadd.f32 %v517, %v439
        %v519 = vadd.f32 %v518, %v440
        %v520 = vadd.f32 %v519, %v441
        %v521 = vadd.f32 %v520, %v442
        %522 = vadd.xlane.f32.xlu0 %v521
        %v523 = vpop.xlane.xlu0 %522
        %v524 = vadd.f32 %v443, %v444
        %v525 = vadd.f32 %v524, %v445
        %v526 = vadd.f32 %v525, %v446
        %v527 = vadd.f32 %v526, %v447
        %v528 = vadd.f32 %v527, %v448
        %v529 = vadd.f32 %v528, %v449
        %v530 = vadd.f32 %v529, %v450
        %v531 = vadd.f32 %v530, %v451
        %v532 = vadd.f32 %v531, %v452
        %v533 = vadd.f32 %v532, %v453
        %v534 = vadd.f32 %v533, %v454
        %v535 = vadd.f32 %v534, %v455
        %v536 = vadd.f32 %v535, %v456
        %v537 = vadd.f32 %v536, %v457
        %v538 = vadd.f32 %v537, %v458
        %539 = vadd.xlane.f32.xlu0 %v538
        %v540 = vpop.xlane.xlu0 %539
        %v541 = vadd.f32 %v459, %v460
        %v542 = vadd.f32 %v541, %v461
        %v543 = vadd.f32 %v542, %v462
        %v544 = vadd.f32 %v543, %v463
        %v545 = vadd.f32 %v544, %v464
        %v546 = vadd.f32 %v545, %v465
        %v547 = vadd.f32 %v546, %v466
        %v548 = vadd.f32 %v547, %v467
        %v549 = vadd.f32 %v548, %v468
        %v550 = vadd.f32 %v549, %v469
        %v551 = vadd.f32 %v550, %v470
        %v552 = vadd.f32 %v551, %v471
        %v553 = vadd.f32 %v552, %v472
        %v554 = vadd.f32 %v553, %v473
        %v555 = vadd.f32 %v554, %v474
        %556 = vadd.xlane.f32.xlu0 %v555
        %v557 = vpop.xlane.xlu0 %556
        %v558 = vadd.f32 %v475, %v476
        %v559 = vadd.f32 %v558, %v477
        %v560 = vadd.f32 %v559, %v478
        %v561 = vadd.f32 %v560, %v479
        %v562 = vadd.f32 %v561, %v480
        %v563 = vadd.f32 %v562, %v481
        %v564 = vadd.f32 %v563, %v482
        %v565 = vadd.f32 %v564, %v483
        %v566 = vadd.f32 %v565, %v484
        %v567 = vadd.f32 %v566, %v485
        %v568 = vadd.f32 %v567, %v486
        %v569 = vadd.f32 %v568, %v487
        %v570 = vadd.f32 %v569, %v488
        %v571 = vadd.f32 %v570, %v489
        %v572 = vadd.f32 %v571, %v490
        %573 = vadd.xlane.f32.xlu0 %v572
        %v574 = vpop.xlane.xlu0 %573
        %v575 = vadd.f32 %v491, %v492
        %v576 = vadd.f32 %v575, %v493
        %v577 = vadd.f32 %v576, %v494
        %v578 = vadd.f32 %v577, %v495
        %v579 = vadd.f32 %v578, %v496
        %v580 = vadd.f32 %v579, %v497
        %v581 = vadd.f32 %v580, %v498
        %v582 = vadd.f32 %v581, %v499
        %v583 = vadd.f32 %v582, %v500
        %v584 = vadd.f32 %v583, %v501
        %v585 = vadd.f32 %v584, %v502
        %v586 = vadd.f32 %v585, %v503
        %v587 = vadd.f32 %v586, %v504
        %v588 = vadd.f32 %v587, %v505
        %v589 = vadd.f32 %v588, %v506
        %590 = vadd.xlane.f32.xlu0 %v589
        %v591 = vpop.xlane.xlu0 %590
        %v592 = vmul.f32 %v267, %v267
        %v593 = vmul.f32 %v268, %v268
        %v594 = vmul.f32 %v269, %v269
        %v595 = vmul.f32 %v270, %v270
        %v596 = vmul.f32 %v271, %v271
        %v597 = vmul.f32 %v272, %v272
        %v598 = vmul.f32 %v273, %v273
        %v599 = vmul.f32 %v274, %v274
        %v600 = vmul.f32 %v275, %v275
        %v601 = vmul.f32 %v276, %v276
        %v602 = vmul.f32 %v277, %v277
        %v603 = vmul.f32 %v278, %v278
        %v604 = vmul.f32 %v279, %v279
        %v605 = vmul.f32 %v280, %v280
        %v606 = vmul.f32 %v281, %v281
        %v607 = vmul.f32 %v282, %v282
        %v608 = vmul.f32 %v283, %v283
        %v609 = vmul.f32 %v284, %v284
        %v610 = vmul.f32 %v285, %v285
        %v611 = vmul.f32 %v286, %v286
        %v612 = vmul.f32 %v287, %v287
        %v613 = vmul.f32 %v288, %v288
        %v614 = vmul.f32 %v289, %v289
        %v615 = vmul.f32 %v290, %v290
        %v616 = vmul.f32 %v291, %v291
        %v617 = vmul.f32 %v292, %v292
        %v618 = vmul.f32 %v293, %v293
        %v619 = vmul.f32 %v294, %v294
        %v620 = vmul.f32 %v295, %v295
        %v621 = vmul.f32 %v296, %v296
        %v622 = vmul.f32 %v297, %v297
        %v623 = vmul.f32 %v298, %v298
        %v624 = vmul.f32 %v299, %v299
        %v625 = vmul.f32 %v300, %v300
        %v626 = vmul.f32 %v301, %v301
        %v627 = vmul.f32 %v302, %v302
        %v628 = vmul.f32 %v303, %v303
        %v629 = vmul.f32 %v304, %v304
        %v630 = vmul.f32 %v305, %v305
        %v631 = vmul.f32 %v306, %v306
        %v632 = vmul.f32 %v307, %v307
        %v633 = vmul.f32 %v308, %v308
        %v634 = vmul.f32 %v309, %v309
        %v635 = vmul.f32 %v310, %v310
        %v636 = vmul.f32 %v311, %v311
        %v637 = vmul.f32 %v312, %v312
        %v638 = vmul.f32 %v313, %v313
        %v639 = vmul.f32 %v314, %v314
        %v640 = vmul.f32 %v315, %v315
        %v641 = vmul.f32 %v316, %v316
        %v642 = vmul.f32 %v317, %v317
        %v643 = vmul.f32 %v318, %v318
        %v644 = vmul.f32 %v319, %v319
        %v645 = vmul.f32 %v320, %v320
        %v646 = vmul.f32 %v321, %v321
        %v647 = vmul.f32 %v322, %v322
        %v648 = vmul.f32 %v323, %v323
        %v649 = vmul.f32 %v324, %v324
        %v650 = vmul.f32 %v325, %v325
        %v651 = vmul.f32 %v326, %v326
        %v652 = vmul.f32 %v327, %v327
        %v653 = vmul.f32 %v328, %v328
        %v654 = vmul.f32 %v329, %v329
        %v655 = vmul.f32 %v330, %v330
        %v656 = vmul.f32 %v331, %v331
        %v657 = vmul.f32 %v332, %v332
        %v658 = vmul.f32 %v333, %v333
        %v659 = vmul.f32 %v334, %v334
        %v660 = vmul.f32 %v335, %v335
        %v661 = vmul.f32 %v336, %v336
        %v662 = vmul.f32 %v337, %v337
        %v663 = vmul.f32 %v338, %v338
        %v664 = vmul.f32 %v339, %v339
        %v665 = vmul.f32 %v340, %v340
        %v666 = vmul.f32 %v341, %v341
        %v667 = vmul.f32 %v342, %v342
        %v668 = vmul.f32 %v343, %v343
        %v669 = vmul.f32 %v344, %v344
        %v670 = vmul.f32 %v345, %v345
        %v671 = vmul.f32 %v346, %v346
        %v672 = vadd.f32 %v592, %v593
        %v673 = vadd.f32 %v672, %v594
        %v674 = vadd.f32 %v673, %v595
        %v675 = vadd.f32 %v674, %v596
        %v676 = vadd.f32 %v675, %v597
        %v677 = vadd.f32 %v676, %v598
        %v678 = vadd.f32 %v677, %v599
        %v679 = vadd.f32 %v678, %v600
        %v680 = vadd.f32 %v679, %v601
        %v681 = vadd.f32 %v680, %v602
        %v682 = vadd.f32 %v681, %v603
        %v683 = vadd.f32 %v682, %v604
        %v684 = vadd.f32 %v683, %v605
        %v685 = vadd.f32 %v684, %v606
        %v686 = vadd.f32 %v685, %v607
        %687 = vadd.xlane.f32.xlu0 %v686
        %v688 = vpop.xlane.xlu0 %687
        %v689 = vadd.f32 %v608, %v609
        %v690 = vadd.f32 %v689, %v610
        %v691 = vadd.f32 %v690, %v611
        %v692 = vadd.f32 %v691, %v612
        %v693 = vadd.f32 %v692, %v613
        %v694 = vadd.f32 %v693, %v614
        %v695 = vadd.f32 %v694, %v615
        %v696 = vadd.f32 %v695, %v616
        %v697 = vadd.f32 %v696, %v617
        %v698 = vadd.f32 %v697, %v618
        %v699 = vadd.f32 %v698, %v619
        %v700 = vadd.f32 %v699, %v620
        %v701 = vadd.f32 %v700, %v621
        %v702 = vadd.f32 %v701, %v622
        %v703 = vadd.f32 %v702, %v623
        %704 = vadd.xlane.f32.xlu0 %v703
        %v705 = vpop.xlane.xlu0 %704
        %v706 = vadd.f32 %v624, %v625
        %v707 = vadd.f32 %v706, %v626
        %v708 = vadd.f32 %v707, %v627
        %v709 = vadd.f32 %v708, %v628
        %v710 = vadd.f32 %v709, %v629
        %v711 = vadd.f32 %v710, %v630
        %v712 = vadd.f32 %v711, %v631
        %v713 = vadd.f32 %v712, %v632
        %v714 = vadd.f32 %v713, %v633
        %v715 = vadd.f32 %v714, %v634
        %v716 = vadd.f32 %v715, %v635
        %v717 = vadd.f32 %v716, %v636
        %v718 = vadd.f32 %v717, %v637
        %v719 = vadd.f32 %v718, %v638
        %v720 = vadd.f32 %v719, %v639
        %721 = vadd.xlane.f32.xlu0 %v720
        %v722 = vpop.xlane.xlu0 %721
        %v723 = vadd.f32 %v640, %v641
        %v724 = vadd.f32 %v723, %v642
        %v725 = vadd.f32 %v724, %v643
        %v726 = vadd.f32 %v725, %v644
        %v727 = vadd.f32 %v726, %v645
        %v728 = vadd.f32 %v727, %v646
        %v729 = vadd.f32 %v728, %v647
        %v730 = vadd.f32 %v729, %v648
        %v731 = vadd.f32 %v730, %v649
        %v732 = vadd.f32 %v731, %v650
        %v733 = vadd.f32 %v732, %v651
        %v734 = vadd.f32 %v733, %v652
        %v735 = vadd.f32 %v734, %v653
        %v736 = vadd.f32 %v735, %v654
        %v737 = vadd.f32 %v736, %v655
        %738 = vadd.xlane.f32.xlu0 %v737
        %v739 = vpop.xlane.xlu0 %738
        %v740 = vadd.f32 %v656, %v657
        %v741 = vadd.f32 %v740, %v658
        %v742 = vadd.f32 %v741, %v659
        %v743 = vadd.f32 %v742, %v660
        %v744 = vadd.f32 %v743, %v661
        %v745 = vadd.f32 %v744, %v662
        %v746 = vadd.f32 %v745, %v663
        %v747 = vadd.f32 %v746, %v664
        %v748 = vadd.f32 %v747, %v665
        %v749 = vadd.f32 %v748, %v666
        %v750 = vadd.f32 %v749, %v667
        %v751 = vadd.f32 %v750, %v668
        %v752 = vadd.f32 %v751, %v669
        %v753 = vadd.f32 %v752, %v670
        %v754 = vadd.f32 %v753, %v671
        %755 = vadd.xlane.f32.xlu0 %v754
        %v756 = vpop.xlane.xlu0 %755
        %v757 = vmul.f32 %v347, %v347
        %v758 = vmul.f32 %v348, %v348
        %v759 = vmul.f32 %v349, %v349
        %v760 = vmul.f32 %v350, %v350
        %v761 = vmul.f32 %v351, %v351
        %v762 = vmul.f32 %v352, %v352
        %v763 = vmul.f32 %v353, %v353
        %v764 = vmul.f32 %v354, %v354
        %v765 = vmul.f32 %v355, %v355
        %v766 = vmul.f32 %v356, %v356
        %v767 = vmul.f32 %v357, %v357
        %v768 = vmul.f32 %v358, %v358
        %v769 = vmul.f32 %v359, %v359
        %v770 = vmul.f32 %v360, %v360
        %v771 = vmul.f32 %v361, %v361
        %v772 = vmul.f32 %v362, %v362
        %v773 = vmul.f32 %v363, %v363
        %v774 = vmul.f32 %v364, %v364
        %v775 = vmul.f32 %v365, %v365
        %v776 = vmul.f32 %v366, %v366
        %v777 = vmul.f32 %v367, %v367
        %v778 = vmul.f32 %v368, %v368
        %v779 = vmul.f32 %v369, %v369
        %v780 = vmul.f32 %v370, %v370
        %v781 = vmul.f32 %v371, %v371
        %v782 = vmul.f32 %v372, %v372
        %v783 = vmul.f32 %v373, %v373
        %v784 = vmul.f32 %v374, %v374
        %v785 = vmul.f32 %v375, %v375
        %v786 = vmul.f32 %v376, %v376
        %v787 = vmul.f32 %v377, %v377
        %v788 = vmul.f32 %v378, %v378
        %v789 = vmul.f32 %v379, %v379
        %v790 = vmul.f32 %v380, %v380
        %v791 = vmul.f32 %v381, %v381
        %v792 = vmul.f32 %v382, %v382
        %v793 = vmul.f32 %v383, %v383
        %v794 = vmul.f32 %v384, %v384
        %v795 = vmul.f32 %v385, %v385
        %v796 = vmul.f32 %v386, %v386
        %v797 = vmul.f32 %v387, %v387
        %v798 = vmul.f32 %v388, %v388
        %v799 = vmul.f32 %v389, %v389
        %v800 = vmul.f32 %v390, %v390
        %v801 = vmul.f32 %v391, %v391
        %v802 = vmul.f32 %v392, %v392
        %v803 = vmul.f32 %v393, %v393
        %v804 = vmul.f32 %v394, %v394
        %v805 = vmul.f32 %v395, %v395
        %v806 = vmul.f32 %v396, %v396
        %v807 = vmul.f32 %v397, %v397
        %v808 = vmul.f32 %v398, %v398
        %v809 = vmul.f32 %v399, %v399
        %v810 = vmul.f32 %v400, %v400
        %v811 = vmul.f32 %v401, %v401
        %v812 = vmul.f32 %v402, %v402
        %v813 = vmul.f32 %v403, %v403
        %v814 = vmul.f32 %v404, %v404
        %v815 = vmul.f32 %v405, %v405
        %v816 = vmul.f32 %v406, %v406
        %v817 = vmul.f32 %v407, %v407
        %v818 = vmul.f32 %v408, %v408
        %v819 = vmul.f32 %v409, %v409
        %v820 = vmul.f32 %v410, %v410
        %v821 = vmul.f32 %v411, %v411
        %v822 = vmul.f32 %v412, %v412
        %v823 = vmul.f32 %v413, %v413
        %v824 = vmul.f32 %v414, %v414
        %v825 = vmul.f32 %v415, %v415
        %v826 = vmul.f32 %v416, %v416
        %v827 = vmul.f32 %v417, %v417
        %v828 = vmul.f32 %v418, %v418
        %v829 = vmul.f32 %v419, %v419
        %v830 = vmul.f32 %v420, %v420
        %v831 = vmul.f32 %v421, %v421
        %v832 = vmul.f32 %v422, %v422
        %v833 = vmul.f32 %v423, %v423
        %v834 = vmul.f32 %v424, %v424
        %v835 = vmul.f32 %v425, %v425
        %v836 = vmul.f32 %v426, %v426
        %v837 = vadd.f32 %v757, %v758
        %v838 = vadd.f32 %v837, %v759
        %v839 = vadd.f32 %v838, %v760
        %v840 = vadd.f32 %v839, %v761
        %v841 = vadd.f32 %v840, %v762
        %v842 = vadd.f32 %v841, %v763
        %v843 = vadd.f32 %v842, %v764
        %v844 = vadd.f32 %v843, %v765
        %v845 = vadd.f32 %v844, %v766
        %v846 = vadd.f32 %v845, %v767
        %v847 = vadd.f32 %v846, %v768
        %v848 = vadd.f32 %v847, %v769
        %v849 = vadd.f32 %v848, %v770
        %v850 = vadd.f32 %v849, %v771
        %v851 = vadd.f32 %v850, %v772
        %852 = vadd.xlane.f32.xlu0 %v851
        %v853 = vpop.xlane.xlu0 %852
        %v854 = vadd.f32 %v773, %v774
        %v855 = vadd.f32 %v854, %v775
        %v856 = vadd.f32 %v855, %v776
        %v857 = vadd.f32 %v856, %v777
        %v858 = vadd.f32 %v857, %v778
        %v859 = vadd.f32 %v858, %v779
        %v860 = vadd.f32 %v859, %v780
        %v861 = vadd.f32 %v860, %v781
        %v862 = vadd.f32 %v861, %v782
        %v863 = vadd.f32 %v862, %v783
        %v864 = vadd.f32 %v863, %v784
        %v865 = vadd.f32 %v864, %v785
        %v866 = vadd.f32 %v865, %v786
        %v867 = vadd.f32 %v866, %v787
        %v868 = vadd.f32 %v867, %v788
        %869 = vadd.xlane.f32.xlu0 %v868
        %v870 = vpop.xlane.xlu0 %869
        %v871 = vadd.f32 %v789, %v790
        %v872 = vadd.f32 %v871, %v791
        %v873 = vadd.f32 %v872, %v792
        %v874 = vadd.f32 %v873, %v793
        %v875 = vadd.f32 %v874, %v794
        %v876 = vadd.f32 %v875, %v795
        %v877 = vadd.f32 %v876, %v796
        %v878 = vadd.f32 %v877, %v797
        %v879 = vadd.f32 %v878, %v798
        %v880 = vadd.f32 %v879, %v799
        %v881 = vadd.f32 %v880, %v800
        %v882 = vadd.f32 %v881, %v801
        %v883 = vadd.f32 %v882, %v802
        %v884 = vadd.f32 %v883, %v803
        %v885 = vadd.f32 %v884, %v804
        %886 = vadd.xlane.f32.xlu0 %v885
        %v887 = vpop.xlane.xlu0 %886
        %v888 = vadd.f32 %v805, %v806
        %v889 = vadd.f32 %v888, %v807
        %v890 = vadd.f32 %v889, %v808
        %v891 = vadd.f32 %v890, %v809
        %v892 = vadd.f32 %v891, %v810
        %v893 = vadd.f32 %v892, %v811
        %v894 = vadd.f32 %v893, %v812
        %v895 = vadd.f32 %v894, %v813
        %v896 = vadd.f32 %v895, %v814
        %v897 = vadd.f32 %v896, %v815
        %v898 = vadd.f32 %v897, %v816
        %v899 = vadd.f32 %v898, %v817
        %v900 = vadd.f32 %v899, %v818
        %v901 = vadd.f32 %v900, %v819
        %v902 = vadd.f32 %v901, %v820
        %903 = vadd.xlane.f32.xlu0 %v902
        %v904 = vpop.xlane.xlu0 %903
        %v905 = vadd.f32 %v821, %v822
        %v906 = vadd.f32 %v905, %v823
        %v907 = vadd.f32 %v906, %v824
        %v908 = vadd.f32 %v907, %v825
        %v909 = vadd.f32 %v908, %v826
        %v910 = vadd.f32 %v909, %v827
        %v911 = vadd.f32 %v910, %v828
        %v912 = vadd.f32 %v911, %v829
        %v913 = vadd.f32 %v912, %v830
        %v914 = vadd.f32 %v913, %v831
        %v915 = vadd.f32 %v914, %v832
        %v916 = vadd.f32 %v915, %v833
        %v917 = vadd.f32 %v916, %v834
        %v918 = vadd.f32 %v917, %v835
        %v919 = vadd.f32 %v918, %v836
        %920 = vadd.xlane.f32.xlu0 %v919
        %v921 = vpop.xlane.xlu0 %920
        %v922 = vrsqrt.pop %v688
        %v923 = vmul.f32 %v688, %v922
        %vm924 = vcmp.eq.f32.partialorder %v688, inf
        %v925 = vsel %vm924, %v688, %v923
        %vm926 = vcmp.eq.f32.partialorder %v688, 0.0
        %v927 = vand.u32 %v688, 2147483648
        %v928 = vsel %vm926, %v927, %v925
        %v929 = vrsqrt.pop %v705
        %v930 = vmul.f32 %v705, %v929
        %vm931 = vcmp.eq.f32.partialorder %v705, inf
        %v932 = vsel %vm931, %v705, %v930
        %vm933 = vcmp.eq.f32.partialorder %v705, 0.0
        %v934 = vand.u32 %v705, 2147483648
        %v935 = vsel %vm933, %v934, %v932
        %v936 = vrsqrt.pop %v722
        %v937 = vmul.f32 %v722, %v936
        %vm938 = vcmp.eq.f32.partialorder %v722, inf
        %v939 = vsel %vm938, %v722, %v937
        %vm940 = vcmp.eq.f32.partialorder %v722, 0.0
        %v941 = vand.u32 %v722, 2147483648
        %v942 = vsel %vm940, %v941, %v939
        %v943 = vrsqrt.pop %v739
        %v944 = vmul.f32 %v739, %v943
        %vm945 = vcmp.eq.f32.partialorder %v739, inf
        %v946 = vsel %vm945, %v739, %v944
        %vm947 = vcmp.eq.f32.partialorder %v739, 0.0
        %v948 = vand.u32 %v739, 2147483648
        %v949 = vsel %vm947, %v948, %v946
        %v950 = vrsqrt.pop %v756
        %v951 = vmul.f32 %v756, %v950
        %vm952 = vcmp.eq.f32.partialorder %v756, inf
        %v953 = vsel %vm952, %v756, %v951
        %vm954 = vcmp.eq.f32.partialorder %v756, 0.0
        %v955 = vand.u32 %v756, 2147483648
        %v956 = vsel %vm954, %v955, %v953
        %v957 = vrsqrt.pop %v853
        %v958 = vmul.f32 %v853, %v957
        %vm959 = vcmp.eq.f32.partialorder %v853, inf
        %v960 = vsel %vm959, %v853, %v958
        %vm961 = vcmp.eq.f32.partialorder %v853, 0.0
        %v962 = vand.u32 %v853, 2147483648
        %v963 = vsel %vm961, %v962, %v960
        %v964 = vrsqrt.pop %v870
        %v965 = vmul.f32 %v870, %v964
        %vm966 = vcmp.eq.f32.partialorder %v870, inf
        %v967 = vsel %vm966, %v870, %v965
        %vm968 = vcmp.eq.f32.partialorder %v870, 0.0
        %v969 = vand.u32 %v870, 2147483648
        %v970 = vsel %vm968, %v969, %v967
        %v971 = vrsqrt.pop %v887
        %v972 = vmul.f32 %v887, %v971
        %vm973 = vcmp.eq.f32.partialorder %v887, inf
        %v974 = vsel %vm973, %v887, %v972
        %vm975 = vcmp.eq.f32.partialorder %v887, 0.0
        %v976 = vand.u32 %v887, 2147483648
        %v977 = vsel %vm975, %v976, %v974
        %v978 = vrsqrt.pop %v904
        %v979 = vmul.f32 %v904, %v978
        %vm980 = vcmp.eq.f32.partialorder %v904, inf
        %v981 = vsel %vm980, %v904, %v979
        %vm982 = vcmp.eq.f32.partialorder %v904, 0.0
        %v983 = vand.u32 %v904, 2147483648
        %v984 = vsel %vm982, %v983, %v981
        %v985 = vrsqrt.pop %v921
        %v986 = vmul.f32 %v921, %v985
        %vm987 = vcmp.eq.f32.partialorder %v921, inf
        %v988 = vsel %vm987, %v921, %v986
        %vm989 = vcmp.eq.f32.partialorder %v921, 0.0
        %v990 = vand.u32 %v921, 2147483648
        %v991 = vsel %vm989, %v990, %v988
        %v992 = vmul.f32 %v928, %v963
        %v993 = vmul.f32 %v935, %v970
        %v994 = vmul.f32 %v942, %v977
        %v995 = vmul.f32 %v949, %v984
        %v996 = vmul.f32 %v956, %v991
        %v997 = vmax.f32 %v992, 1e-08
        %v998 = vmax.f32 %v993, 1e-08
        %v999 = vmax.f32 %v994, 1e-08
        %v1000 = vmax.f32 %v995, 1e-08
        %v1001 = vmax.f32 %v996, 1e-08
        %v1002 = vrcp.pop %v997
        %v1003 = vmul.f32 %v523, %v1002
        %v1004 = vrcp.pop %v998
        %v1005 = vmul.f32 %v540, %v1004
        %v1006 = vrcp.pop %v999
        %v1007 = vmul.f32 %v557, %v1006
        %v1008 = vrcp.pop %v1000
        %v1009 = vmul.f32 %v574, %v1008
        %v1010 = vrcp.pop %v1001
        %v1011 = vmul.f32 %v591, %v1010
        %vm1012 = vcmask 7168
        %1013 = vst.msk [vmem:[%s241] sm:$0xff] %vm1012, %v1003
        %1014 = vst.msk [vmem:[%s241 + $0x8] sm:$0xff] %vm1012, %v1005
        %1015 = vst.msk [vmem:[%s241 + $0x10] sm:$0xff] %vm1012, %v1007
        %1016 = vst.msk [vmem:[%s241 + $0x18] sm:$0xff] %vm1012, %v1009
        %1017 = vst.msk [vmem:[%s241 + $0x20] sm:$0xff] %vm1012, %v1011
        %v1018 = vlaneseq
        %v1019 = vshrl.u32 %v1018, 7
        %v1020 = vadd.s32 %v1019, 8
        %v1021 = vadd.s32 %v1019, 16
        %v1022 = vadd.s32 %v1019, 24
        %v1023 = vadd.s32 %v1019, 32
        %s1024 = smul.u32 %s21, 40
        %v1025 = vstv %s1024
        %v1026 = vadd.s32 %v1025, %v1019
        %v1027 = vadd.s32 %v1025, %v1020
        %v1028 = vadd.s32 %v1025, %v1021
        %v1029 = vadd.s32 %v1025, %v1022
        %v1030 = vadd.s32 %v1025, %v1023
        %vm1031 = vcmp.lt.s32.totalorder %v1026, 72
        %vm1032 = vcmp.lt.s32.totalorder %v1027, 72
        %vm1033 = vcmp.lt.s32.totalorder %v1028, 72
        %vm1034 = vcmp.lt.s32.totalorder %v1029, 72
        %vm1035 = vcmp.lt.s32.totalorder %v1030, 72
        %v1036 = vsel %vm1031, %v523, 0.0
        %v1037 = vsel %vm1032, %v540, 0.0
        %v1038 = vsel %vm1033, %v557, 0.0
        %v1039 = vsel %vm1034, %v574, 0.0
        %v1040 = vsel %vm1035, %v591, 0.0
        %v1041 = vsel %vm1012, %v1036, 0.0
        %v1042 = vsel %vm1012, %v1037, 0.0
        %v1043 = vadd.f32 %v1041, %v1042
        %v1044 = vsel %vm1012, %v1038, 0.0
        %v1045 = vadd.f32 %v1043, %v1044
        %v1046 = vsel %vm1012, %v1039, 0.0
        %v1047 = vadd.f32 %v1045, %v1046
        %v1048 = vsel %vm1012, %v1040, 0.0
        %v1049 = vadd.f32 %v1047, %v1048
        %1050 = vadd.xlane.f32.xlu0 %v1049
        %v1051 = vpop.xlane.xlu0 %1050
        %v1052 = vrot.slane %v1051, 4
        %v1053 = vadd.f32 %v1051, %v1052
        %v1054 = vrot.slane %v1053, 2
        %v1055 = vadd.f32 %v1053, %v1054
        %v1056 = vrot.slane %v1055, 1
        %v1057 = vadd.f32 %v1055, %v1056
        %s1058 = vtos %v1057
        %v1059 = vsel %vm1031, %v688, 0.0
        %v1060 = vsel %vm1032, %v705, 0.0
        %v1061 = vsel %vm1033, %v722, 0.0
        %v1062 = vsel %vm1034, %v739, 0.0
        %v1063 = vsel %vm1035, %v756, 0.0
        %v1064 = vsel %vm1012, %v1059, 0.0
        %v1065 = vsel %vm1012, %v1060, 0.0
        %v1066 = vadd.f32 %v1064, %v1065
        %v1067 = vsel %vm1012, %v1061, 0.0
        %v1068 = vadd.f32 %v1066, %v1067
        %v1069 = vsel %vm1012, %v1062, 0.0
        %v1070 = vadd.f32 %v1068, %v1069
        %v1071 = vsel %vm1012, %v1063, 0.0
        %v1072 = vadd.f32 %v1070, %v1071
        %1073 = vadd.xlane.f32.xlu0 %v1072
        %v1074 = vpop.xlane.xlu0 %1073
        %v1075 = vrot.slane %v1074, 4
        %v1076 = vadd.f32 %v1074, %v1075
        %v1077 = vrot.slane %v1076, 2
        %v1078 = vadd.f32 %v1076, %v1077
        %v1079 = vrot.slane %v1078, 1
        %v1080 = vadd.f32 %v1078, %v1079
        %s1081 = vtos %v1080
        %v1082 = vsel %vm1031, %v853, 0.0
        %v1083 = vsel %vm1032, %v870, 0.0
        %v1084 = vsel %vm1033, %v887, 0.0
        %v1085 = vsel %vm1034, %v904, 0.0
        %v1086 = vsel %vm1035, %v921, 0.0
        %v1087 = vsel %vm1012, %v1082, 0.0
        %v1088 = vsel %vm1012, %v1083, 0.0
        %v1089 = vadd.f32 %v1087, %v1088
        %v1090 = vsel %vm1012, %v1084, 0.0
        %v1091 = vadd.f32 %v1089, %v1090
        %v1092 = vsel %vm1012, %v1085, 0.0
        %v1093 = vadd.f32 %v1091, %v1092
        %v1094 = vsel %vm1012, %v1086, 0.0
        %v1095 = vadd.f32 %v1093, %v1094
        %1096 = vadd.xlane.f32.xlu0 %v1095
        %v1097 = vpop.xlane.xlu0 %1096
        %v1098 = vrot.slane %v1097, 4
        %v1099 = vadd.f32 %v1097, %v1098
        %v1100 = vrot.slane %v1099, 2
        %v1101 = vadd.f32 %v1099, %v1100
        %v1102 = vrot.slane %v1101, 1
        %v1103 = vadd.f32 %v1101, %v1102
        %s1104 = vtos %v1103
        %v1105 = vlaneseq
        %v1106 = vand.u32 %v1105, 127
        %vm1107 = vcmp.eq.s32.totalorder %v1106, 0
        %vm1108 = vcmp.eq.s32.totalorder %v1106, 1
        %v1109 = vstv %s1081
        %v1110 = vstv %s1104
        %v1111 = vsel %vm1108, %v1109, %v1110
        %v1112 = vstv %s1058
        %v1113 = vsel %vm1107, %v1112, %v1111
        %vm1114 = vcmask 16384
        %1115 = vst.msk [vmem:[%s266] sm:$0x1] %vm1114, %v1113
        %s1116 = sand.u32 %s81, 1
        %s1117 = sand.u32 %s81, 1
        %s1118 = smul.addr %s1117, 40
        %s1119 = scalar_lea.vmem [#allocation6], %s1118
        %p1120 = scmp.lt.s32.totalorder %s21, 1
        %s1121 = scalar_select %p1120, %s21, 1
        %s1122 = scalar_lea.vmem %s3, %s1121
        // Predicated region
        $region37: #{cosine_l2_loss.1} parent=27 // pred_check
          %p1123 = pneg %p91
        $region38: #{cosine_l2_loss.1} parent=27 // pred_check_branch
          %1125 = sbr.rel (%p1123) target = $region40
        $region39: #{cosine_l2_loss.1} parent=27 // pred_region
          %s1126 = smul.u32 5, %s21
          %s1127 = ssub.s32 9, %s1126
          %p1128 = scmp.lt.s32.totalorder %s1127, 5
          %s1129 = scalar_select %p1128, %s1127, 5
          %s1130 = smul.u32 128, %s1129
          %p1131 = scmp.ne.s32.totalorder 0, %s1130
          %s1132 = smul.addr %s1126, 8
          %s1133 = scalar_lea.vmem %s2, %s1132
          // Predicated region
          $region41: #{cosine_l2_loss.1} parent=39 // pred_check
            %p1134 = pneg %p1131
          $region42: #{cosine_l2_loss.1} parent=39 // pred_check_branch
            %1136 = sbr.rel (%p1134) target = $region44
          $region43: #{cosine_l2_loss.1} parent=39 // pred_region
            // Predicated region
            $region45: #{cosine_l2_loss.1} parent=43 // pred_check
              _
            $region46: #{cosine_l2_loss.1} parent=43 // pred_check_branch
              %1138 = sbr.rel (0) target = $region48
            $region47: #{cosine_l2_loss.1} parent=43 // pred_region
              // Predicated region
              $region67: #{cosine_l2_loss.1} parent=47 // pred_check
                _
              $region68: #{cosine_l2_loss.1} parent=47 // pred_check_branch
                %1197 = sbr.rel (0) target = $region70
              $region69: #{cosine_l2_loss.1} parent=47 // pred_region
                %s1198 = sdiv.u32.pop %s1129, 5
                %s1199 = srem.u32.pop %s1129, 5
                // While loop
                $region71: #{cosine_l2_loss.1} parent=69 // loop_pre_header
                  _
                $region72: #{cosine_l2_loss.1} parent=69 // loop_header
                  %s1201 = sphi 0, %s1203
                  %p1202 = scmp.ge.s32.totalorder %s1201, %s1198
                  %s1206 = sphi 0, %s1221
                  %s1207 = sphi %s1119, %s1224
                  %s1208 = sphi %s1133, %s1225
                $region73: #{cosine_l2_loss.1} parent=69 // loop_header_branch
                  %1205 = sbr.rel (%p1202) target = $region77
                $region74: #{cosine_l2_loss.1} parent=69 // loop_body
                  %v1209 = vld [vmem:[%s1207] sm:$0xff]
                  %1210 = vst [vmem:[%s1208] sm:$0xff] %v1209
                  %v1211 = vld [vmem:[%s1207 + $0x8] sm:$0xff]
                  %1212 = vst [vmem:[%s1208 + $0x8] sm:$0xff] %v1211
                  %v1213 = vld [vmem:[%s1207 + $0x10] sm:$0xff]
                  %1214 = vst [vmem:[%s1208 + $0x10] sm:$0xff] %v1213
                  %v1215 = vld [vmem:[%s1207 + $0x18] sm:$0xff]
                  %1216 = vst [vmem:[%s1208 + $0x18] sm:$0xff] %v1215
                  %v1217 = vld [vmem:[%s1207 + $0x20] sm:$0xff]
                  %1218 = vst [vmem:[%s1208 + $0x20] sm:$0xff] %v1217
                  %s1219 = sadd.s32 1, %s1206
                  %p1220 = scmp.ge.s32.totalorder %s1219, %s1198
                  %s1221 = scalar_select %p1220, 0, %s1219
                  %s1222 = smul.u32 %s1221, 40
                  %s1223 = smul.u32 %s1221, 40
                  %s1224 = scalar_lea.vmem %s1119, %s1222 [#allocation6]
                  %s1225 = scalar_lea.vmem %s1133, %s1223
                $region75: #{cosine_l2_loss.1} parent=69 // loop_footer
                  %s1203 = sadd.s32 %s1201, 1
                $region76: #{cosine_l2_loss.1} parent=69 // loop_footer_branch
                  %1200 = sbr.rel target = $region72
                $region77: #{cosine_l2_loss.1} parent=69 // loop_exit
                  _
                %s1226 = sdiv.u32.pop %s1129, 5
                %s1227 = srem.u32.pop %s1129, 5
                %s1228 = smul.u32 %s1226, 5
                %s1229 = smul.u32 8, %s1228
                %s1230 = scalar_lea.vmem %s1119, %s1229 [#allocation6]
                %s1231 = smul.u32 8, %s1228
                %s1232 = scalar_lea.vmem %s1133, %s1231
                // While loop
                $region78: #{cosine_l2_loss.1} parent=69 // loop_pre_header
                  _
                $region79: #{cosine_l2_loss.1} parent=69 // loop_header
                  %s1234 = sphi 0, %s1236
                  %p1235 = scmp.ge.s32.totalorder %s1234, %s1227
                  %s1239 = sphi 0, %s1246
                  %s1240 = sphi %s1230, %s1249
                  %s1241 = sphi %s1232, %s1250
                $region80: #{cosine_l2_loss.1} parent=69 // loop_header_branch
                  %1238 = sbr.rel (%p1235) target = $region84
                $region81: #{cosine_l2_loss.1} parent=69 // loop_body
                  %v1242 = vld [vmem:[%s1240] sm:$0xff]
                  %1243 = vst [vmem:[%s1241] sm:$0xff] %v1242
                  %s1244 = sadd.s32 1, %s1239
                  %p1245 = scmp.ge.s32.totalorder %s1244, %s1227
                  %s1246 = scalar_select %p1245, 0, %s1244
                  %s1247 = smul.u32 %s1246, 8
                  %s1248 = smul.u32 %s1246, 8
                  %s1249 = scalar_lea.vmem %s1230, %s1247 [#allocation6]
                  %s1250 = scalar_lea.vmem %s1232, %s1248
                $region82: #{cosine_l2_loss.1} parent=69 // loop_footer
                  %s1236 = sadd.s32 %s1234, 1
                $region83: #{cosine_l2_loss.1} parent=69 // loop_footer_branch
                  %1233 = sbr.rel target = $region79
                $region84: #{cosine_l2_loss.1} parent=69 // loop_exit
                  _
              $region70: #{cosine_l2_loss.1} parent=47 // pred_fallthru
                _
              // Predicated region
              $region85: #{cosine_l2_loss.1} parent=47 // pred_check
                _
              $region86: #{cosine_l2_loss.1} parent=47 // pred_check_branch
                %1252 = sbr.rel target = $region88
              $region87: #{cosine_l2_loss.1} parent=47 // pred_region
                _
              $region88: #{cosine_l2_loss.1} parent=47 // pred_fallthru
                _
            $region48: #{cosine_l2_loss.1} parent=43 // pred_fallthru
              _
            // Predicated region
            $region49: #{cosine_l2_loss.1} parent=43 // pred_check
              _
            $region50: #{cosine_l2_loss.1} parent=43 // pred_check_branch
              %1140 = sbr.rel target = $region52
            $region51: #{cosine_l2_loss.1} parent=43 // pred_region
              %s1142 = ssub.s32 256, 1
              %s1143 = sdiv.u32.pop %s1129, 5
              %s1144 = srem.u32.pop %s1129, 5
              // While loop
              $region53: #{cosine_l2_loss.1} parent=51 // loop_pre_header
                _
              $region54: #{cosine_l2_loss.1} parent=51 // loop_header
                %s1146 = sphi 0, %s1148
                %p1147 = scmp.ge.s32.totalorder %s1146, %s1143
                %s1151 = sphi 0, %s1166
                %s1152 = sphi %s1119, %s1169
                %s1153 = sphi %s1133, %s1170
              $region55: #{cosine_l2_loss.1} parent=51 // loop_header_branch
                %1150 = sbr.rel (%p1147) target = $region59
              $region56: #{cosine_l2_loss.1} parent=51 // loop_body
                %v1154 = vld [vmem:[%s1152] sm:%s1142]
                %1155 = vst [vmem:[%s1153] sm:%s1142] %v1154
                %v1156 = vld [vmem:[%s1152 + $0x8] sm:%s1142]
                %1157 = vst [vmem:[%s1153 + $0x8] sm:%s1142] %v1156
                %v1158 = vld [vmem:[%s1152 + $0x10] sm:%s1142]
                %1159 = vst [vmem:[%s1153 + $0x10] sm:%s1142] %v1158
                %v1160 = vld [vmem:[%s1152 + $0x18] sm:%s1142]
                %1161 = vst [vmem:[%s1153 + $0x18] sm:%s1142] %v1160
                %v1162 = vld [vmem:[%s1152 + $0x20] sm:%s1142]
                %1163 = vst [vmem:[%s1153 + $0x20] sm:%s1142] %v1162
                %s1164 = sadd.s32 1, %s1151
                %p1165 = scmp.ge.s32.totalorder %s1164, %s1143
                %s1166 = scalar_select %p1165, 0, %s1164
                %s1167 = smul.u32 %s1166, 40
                %s1168 = smul.u32 %s1166, 40
                %s1169 = scalar_lea.vmem %s1119, %s1167 [#allocation6]
                %s1170 = scalar_lea.vmem %s1133, %s1168
              $region57: #{cosine_l2_loss.1} parent=51 // loop_footer
                %s1148 = sadd.s32 %s1146, 1
              $region58: #{cosine_l2_loss.1} parent=51 // loop_footer_branch
                %1145 = sbr.rel target = $region54
              $region59: #{cosine_l2_loss.1} parent=51 // loop_exit
                _
              %s1171 = sdiv.u32.pop %s1129, 5
              %s1172 = srem.u32.pop %s1129, 5
              %s1173 = smul.u32 %s1171, 5
              %s1174 = smul.u32 8, %s1173
              %s1175 = scalar_lea.vmem %s1119, %s1174 [#allocation6]
              %s1176 = smul.u32 8, %s1173
              %s1177 = scalar_lea.vmem %s1133, %s1176
              // While loop
              $region60: #{cosine_l2_loss.1} parent=51 // loop_pre_header
                _
              $region61: #{cosine_l2_loss.1} parent=51 // loop_header
                %s1179 = sphi 0, %s1181
                %p1180 = scmp.ge.s32.totalorder %s1179, %s1172
                %s1184 = sphi 0, %s1191
                %s1185 = sphi %s1175, %s1194
                %s1186 = sphi %s1177, %s1195
              $region62: #{cosine_l2_loss.1} parent=51 // loop_header_branch
                %1183 = sbr.rel (%p1180) target = $region66
              $region63: #{cosine_l2_loss.1} parent=51 // loop_body
                %v1187 = vld [vmem:[%s1185] sm:%s1142]
                %1188 = vst [vmem:[%s1186] sm:%s1142] %v1187
                %s1189 = sadd.s32 1, %s1184
                %p1190 = scmp.ge.s32.totalorder %s1189, %s1172
                %s1191 = scalar_select %p1190, 0, %s1189
                %s1192 = smul.u32 %s1191, 8
                %s1193 = smul.u32 %s1191, 8
                %s1194 = scalar_lea.vmem %s1175, %s1192 [#allocation6]
                %s1195 = scalar_lea.vmem %s1177, %s1193
              $region64: #{cosine_l2_loss.1} parent=51 // loop_footer
                %s1181 = sadd.s32 %s1179, 1
              $region65: #{cosine_l2_loss.1} parent=51 // loop_footer_branch
                %1178 = sbr.rel target = $region61
              $region66: #{cosine_l2_loss.1} parent=51 // loop_exit
                _
            $region52: #{cosine_l2_loss.1} parent=43 // pred_fallthru
              _
          $region44: #{cosine_l2_loss.1} parent=39 // pred_fallthru
            _
          %1253 = vnop
        $region40: #{cosine_l2_loss.1} parent=27 // pred_fallthru
          _
        // Predicated region
        $region89: #{cosine_l2_loss.1} parent=27 // pred_check
          %p1254 = pneg %p117
        $region90: #{cosine_l2_loss.1} parent=27 // pred_check_branch
          %1256 = sbr.rel (%p1254) target = $region92
        $region91: #{cosine_l2_loss.1} parent=27 // pred_region
          _
        $region92: #{cosine_l2_loss.1} parent=27 // pred_fallthru
          _
      $region28: #{cosine_l2_loss.1} parent=5 // pred_fallthru
        _
      %p1257 = scmp.le.s32.totalorder 2, %s16
      // Predicated region
      $region93: #{cosine_l2_loss.1} parent=5 // pred_check
        %p1258 = pneg %p1257
      $region94: #{cosine_l2_loss.1} parent=5 // pred_check_branch
        %1260 = sbr.rel (%p1258) target = $region96
      $region95: #{cosine_l2_loss.1} parent=5 // pred_region
        %s1261 = ssub.s32 %s16, 2
        // Predicated region
        $region97: #{cosine_l2_loss.1} parent=95 // pred_check
          %p1262 = pneg %p97
        $region98: #{cosine_l2_loss.1} parent=95 // pred_check_branch
          %1264 = sbr.rel (%p1262) target = $region100
        $region99: #{cosine_l2_loss.1} parent=95 // pred_region
          %s1265 = sand.u32 %s82, 1
          %s1266 = sand.u32 %s82, 1
          %s1267 = smul.addr %s1266, 40
          %s1268 = scalar_lea.vmem [#allocation6], %s1267
        $region100: #{cosine_l2_loss.1} parent=95 // pred_fallthru
          _
        // Predicated region
        $region101: #{cosine_l2_loss.1} parent=95 // pred_check
          %p1269 = pneg %p123
        $region102: #{cosine_l2_loss.1} parent=95 // pred_check_branch
          %1271 = sbr.rel (%p1269) target = $region104
        $region103: #{cosine_l2_loss.1} parent=95 // pred_region
          %p1272 = scmp.lt.s32.totalorder %s22, 1
          %s1273 = scalar_select %p1272, %s22, 1
          %s1274 = scalar_lea.vmem %s3, %s1273
        $region104: #{cosine_l2_loss.1} parent=95 // pred_fallthru
          _
      $region96: #{cosine_l2_loss.1} parent=5 // pred_fallthru
        _
    $region6: #{cosine_l2_loss.1} parent=1 // loop_footer
      %s20 = sadd.s32 1, %s16
    $region7: #{cosine_l2_loss.1} parent=1 // loop_footer_branch
      %15 = sbr.rel target = $region3
    $region8: #{cosine_l2_loss.1} parent=1 // loop_exit
      _
    %1275 = vsyncpa [#allocation3], 1
    %s1276 = scalar_lea.sflag [#allocation3], 1
    %1277 = vsyncpa %s1276, 1
    %1278 = vsyncpa [#allocation5], 1
    %s1279 = scalar_lea.sflag [#allocation5], 1
    %1280 = vsyncpa %s1279, 1

</llo_original>
